<compile_context>
chip_gen: v6e
topology: v6e:2x2x1
jax: 0.10.0
libtpu: 0.0.40
codegen_flags: <defaults>
</compile_context>

<pallas_src>
import jax
import jax.numpy as jnp
from jax.experimental import pallas as pl
from jax.experimental.pallas import tpu as pltpu


def _round_up(n, m):
    return (n + m - 1) // m * m


def actor_kernel(x_ref, w1_ref, b1_ref, w2_ref, b2_ref, w3_ref, b3_ref, o_ref):
    # x tile: (tb, S) f32 -> bf16 in-kernel (no extra HBM pad/cast pass in the wrapper).
    x = x_ref[...].astype(jnp.bfloat16)

    # fc1 + relu (bf16 MXU inputs, f32 accumulate; Mosaic pads the small K internally)
    h1 = jnp.dot(x, w1_ref[...], preferred_element_type=jnp.float32) + b1_ref[...]
    h1 = jnp.maximum(h1, 0.0)

    # fc2 + relu (lane-dense: hidden padded to a multiple of 128 in the weight arrays)
    h2 = jnp.dot(h1.astype(jnp.bfloat16), w2_ref[...],
                 preferred_element_type=jnp.float32) + b2_ref[...]
    h2 = jnp.maximum(h2, 0.0)

    # fc3 + tanh (w3 columns unpadded -> tanh + writeback only over action_dim lanes)
    h3 = jnp.dot(h2.astype(jnp.bfloat16), w3_ref[...],
                 preferred_element_type=jnp.float32) + b3_ref[...]
    o_ref[...] = jnp.tanh(h3).astype(o_ref.dtype)


def actor_forward(x, params, *, block_b=1024, out_dtype=jnp.bfloat16):
    """x: (B, state_dim) f32. params: w1 (S,H), b1 (1,H), w2 (H,H), b2 (1,H),
    w3 (H,A), b3 (1,A). Returns (B, action_dim) in `out_dtype`."""
    w1, b1, w2, b2, w3, b3 = (params[k] for k in ("w1", "b1", "w2", "b2", "w3", "b3"))
    B, S = x.shape
    H = w1.shape[1]
    A = w3.shape[1]

    # Pad only the hidden width (in the tiny, DMA'd-once parameter arrays).
    h_pad = _round_up(H, 128)
    w1p = jnp.pad(w1, ((0, 0), (0, h_pad - H))).astype(jnp.bfloat16)           # (S, h_pad)
    w2p = jnp.pad(w2, ((0, h_pad - H), (0, h_pad - H))).astype(jnp.bfloat16)   # (h_pad, h_pad)
    w3p = jnp.pad(w3, ((0, h_pad - H), (0, 0))).astype(jnp.bfloat16)           # (h_pad, A)
    b1p = jnp.pad(b1, ((0, 0), (0, h_pad - H))).astype(jnp.float32)            # (1, h_pad)
    b2p = jnp.pad(b2, ((0, 0), (0, h_pad - H))).astype(jnp.float32)            # (1, h_pad)
    b3p = b3.astype(jnp.float32)                                               # (1, A)

    # Batch tiling: >=2 grid steps when B allows (both v7x TCs), 16-row alignment,
    # tile size close to ceil(B / n_steps) so the partial last block wastes <16 rows.
    if B <= 16:
        tb = B  # single block; block dims equal the full array dims -> legal
    else:
        n_steps = max(2, pl.cdiv(B, block_b))
        tb = _round_up(pl.cdiv(B, n_steps), 16)
    grid = (pl.cdiv(B, tb),)

    resident = lambda i: (0, 0)  # constant index_map: params DMA'd once, stay in VMEM

    out = pl.pallas_call(
        actor_kernel,
        out_shape=jax.ShapeDtypeStruct((B, A), out_dtype),
        grid=grid,
        in_specs=[
            pl.BlockSpec((tb, S), lambda i: (i, 0)),   # x: streamed over the batch
            pl.BlockSpec((S, h_pad), resident),        # w1
            pl.BlockSpec((1, h_pad), resident),        # b1
            pl.BlockSpec((h_pad, h_pad), resident),    # w2
            pl.BlockSpec((1, h_pad), resident),        # b2
            pl.BlockSpec((h_pad, A), resident),        # w3
            pl.BlockSpec((1, A), resident),            # b3
        ],
        out_specs=pl.BlockSpec((tb, A), lambda i: (i, 0)),
        compiler_params=pltpu.CompilerParams(
            dimension_semantics=("parallel",),
        ),
    )(x, w1p, b1p, w2p, b2p, w3p, b3p)
    return out


def init_params(key, state_dim, action_dim, hidden_size):
    """Deterministic init mimicking PyTorch Linear default (uniform +/- 1/sqrt(fan_in))."""
    ks = jax.random.split(key, 6)

    def lin(kw, kb, fan_in, fan_out):
        bound = 1.0 / jnp.sqrt(float(fan_in))
        w = jax.random.uniform(kw, (fan_in, fan_out), jnp.float32, -bound, bound)
        b = jax.random.uniform(kb, (1, fan_out), jnp.float32, -bound, bound)
        return w, b

    w1, b1 = lin(ks[0], ks[1], state_dim, hidden_size)
    w2, b2 = lin(ks[2], ks[3], hidden_size, hidden_size)
    w3, b3 = lin(ks[4], ks[5], hidden_size, action_dim)
    return {"w1": w1, "b1": b1, "w2": w2, "b2": b2, "w3": w3, "b3": b3}


def actor_reference(x, p):
    h1 = jnp.maximum(x @ p["w1"] + p["b1"], 0.0)
    h2 = jnp.maximum(h1 @ p["w2"] + p["b2"], 0.0)
    return jnp.tanh(h2 @ p["w3"] + p["b3"])


if __name__ == "__main__":
    key = jax.random.PRNGKey(0)
    k_x, k_p, k_x2 = jax.random.split(key, 3)

    # Small shapes consistent with the module.
    batch, state_dim, action_dim, hidden = 4, 16, 8, 32
    params = init_params(k_p, state_dim, action_dim, hidden)

    # Single-block path (tiny batch).
    x = jax.random.normal(k_x, (batch, state_dim), jnp.float32)
    out = jax.block_until_ready(actor_forward(x, params))
    ref = actor_reference(x, params)
    assert out.shape == (batch, action_dim)
    # bf16 MXU inputs / bf16 output vs f32 reference: loosened tolerance.
    assert jnp.allclose(out.astype(jnp.float32), ref, atol=3e-2, rtol=3e-2), \
        "mismatch vs JAX reference (small batch)"

    # Multi-step grid path (2 steps, partial last block; OOB rows are masked on write).
    x2 = jax.random.normal(k_x2, (40, state_dim), jnp.float32)
    out2 = jax.block_until_ready(actor_forward(x2, params))
    ref2 = actor_reference(x2, params)
    assert out2.shape == (40, action_dim)
    assert jnp.allclose(out2.astype(jnp.float32), ref2, atol=3e-2, rtol=3e-2), \
        "mismatch vs JAX reference (multi-block batch)"

    print("KERNEL_OK")
</pallas_src>

<mosaic_0001>
module attributes {stable_mosaic.version = 11 : i64} {
  func.func @actor_kernel(%arg0: i32, %arg1: memref<4x16xf32, #tpu.memory_space<vmem>>, %arg2: memref<16x128xbf16, #tpu.memory_space<vmem>>, %arg3: memref<1x128xf32, #tpu.memory_space<vmem>>, %arg4: memref<128x128xbf16, #tpu.memory_space<vmem>>, %arg5: memref<1x128xf32, #tpu.memory_space<vmem>>, %arg6: memref<128x8xbf16, #tpu.memory_space<vmem>>, %arg7: memref<1x8xf32, #tpu.memory_space<vmem>>, %arg8: memref<4x8xbf16, #tpu.memory_space<vmem>>) attributes {dimension_semantics = [#tpu.dimension_semantics<parallel>], iteration_bounds = array<i64: 1>, scalar_prefetch = 0 : i64, scratch_operands = 0 : i64, tpu.core_type = #tpu.core_type<tc>, window_params = [{transform_indices = @transform_0, window_bounds = array<i64: 4, 16>}, {pipeline_mode = #tpu.pipeline_mode<synchronous>, transform_indices = @transform_1, window_bounds = array<i64: 16, 128>}, {pipeline_mode = #tpu.pipeline_mode<synchronous>, transform_indices = @transform_2, window_bounds = array<i64: 1, 128>}, {pipeline_mode = #tpu.pipeline_mode<synchronous>, transform_indices = @transform_3, window_bounds = array<i64: 128, 128>}, {pipeline_mode = #tpu.pipeline_mode<synchronous>, transform_indices = @transform_4, window_bounds = array<i64: 1, 128>}, {pipeline_mode = #tpu.pipeline_mode<synchronous>, transform_indices = @transform_5, window_bounds = array<i64: 128, 8>}, {pipeline_mode = #tpu.pipeline_mode<synchronous>, transform_indices = @transform_6, window_bounds = array<i64: 1, 8>}, {transform_indices = @transform_7, window_bounds = array<i64: 4, 8>}]} {
    %c0 = arith.constant 0 : index
    %c0_0 = arith.constant 0 : index
    %0 = vector.load %arg1[%c0, %c0_0] : memref<4x16xf32, #tpu.memory_space<vmem>>, vector<4x16xf32>
    %1 = arith.truncf %0 : vector<4x16xf32> to vector<4x16xbf16>
    %c0_1 = arith.constant 0 : index
    %c0_2 = arith.constant 0 : index
    %2 = vector.load %arg2[%c0_1, %c0_2] : memref<16x128xbf16, #tpu.memory_space<vmem>>, vector<16x128xbf16>
    %cst = arith.constant dense<0.000000e+00> : vector<4x128xf32>
    %3 = tpu.matmul %1, %2, %cst {dimension_numbers = #tpu.dot_dimension_numbers<[1], [0], [0], [1], [0, 0, 1, 1], [], []>} : vector<4x16xbf16>, vector<16x128xbf16>, vector<4x128xf32> -> vector<4x128xf32>
    %c0_3 = arith.constant 0 : index
    %c0_4 = arith.constant 0 : index
    %4 = vector.load %arg3[%c0_3, %c0_4] : memref<1x128xf32, #tpu.memory_space<vmem>>, vector<1x128xf32>
    %5 = vector.broadcast %4 : vector<1x128xf32> to vector<4x128xf32>
    %6 = arith.addf %3, %5 : vector<4x128xf32>
    %cst_5 = arith.constant 0.000000e+00 : f32
    %7 = vector.broadcast %cst_5 : f32 to vector<4x128xf32>
    %8 = arith.maximumf %6, %7 : vector<4x128xf32>
    %9 = arith.truncf %8 : vector<4x128xf32> to vector<4x128xbf16>
    %c0_6 = arith.constant 0 : index
    %c0_7 = arith.constant 0 : index
    %10 = vector.load %arg4[%c0_6, %c0_7] : memref<128x128xbf16, #tpu.memory_space<vmem>>, vector<128x128xbf16>
    %cst_8 = arith.constant dense<0.000000e+00> : vector<4x128xf32>
    %11 = tpu.matmul %9, %10, %cst_8 {dimension_numbers = #tpu.dot_dimension_numbers<[1], [0], [0], [1], [0, 0, 1, 1], [], []>} : vector<4x128xbf16>, vector<128x128xbf16>, vector<4x128xf32> -> vector<4x128xf32>
    %c0_9 = arith.constant 0 : index
    %c0_10 = arith.constant 0 : index
    %12 = vector.load %arg5[%c0_9, %c0_10] : memref<1x128xf32, #tpu.memory_space<vmem>>, vector<1x128xf32>
    %13 = vector.broadcast %12 : vector<1x128xf32> to vector<4x128xf32>
    %14 = arith.addf %11, %13 : vector<4x128xf32>
    %cst_11 = arith.constant 0.000000e+00 : f32
    %15 = vector.broadcast %cst_11 : f32 to vector<4x128xf32>
    %16 = arith.maximumf %14, %15 : vector<4x128xf32>
    %17 = arith.truncf %16 : vector<4x128xf32> to vector<4x128xbf16>
    %c0_12 = arith.constant 0 : index
    %c0_13 = arith.constant 0 : index
    %18 = vector.load %arg6[%c0_12, %c0_13] : memref<128x8xbf16, #tpu.memory_space<vmem>>, vector<128x8xbf16>
    %cst_14 = arith.constant dense<0.000000e+00> : vector<4x8xf32>
    %19 = tpu.matmul %17, %18, %cst_14 {dimension_numbers = #tpu.dot_dimension_numbers<[1], [0], [0], [1], [0, 0, 1, 1], [], []>} : vector<4x128xbf16>, vector<128x8xbf16>, vector<4x8xf32> -> vector<4x8xf32>
    %c0_15 = arith.constant 0 : index
    %c0_16 = arith.constant 0 : index
    %20 = vector.load %arg7[%c0_15, %c0_16] : memref<1x8xf32, #tpu.memory_space<vmem>>, vector<1x8xf32>
    %21 = vector.broadcast %20 : vector<1x8xf32> to vector<4x8xf32>
    %22 = arith.addf %19, %21 : vector<4x8xf32>
    %23 = math.tanh %22 : vector<4x8xf32>
    %24 = arith.truncf %23 : vector<4x8xf32> to vector<4x8xbf16>
    %c0_17 = arith.constant 0 : index
    %c0_18 = arith.constant 0 : index
    %25 = vector.load %arg8[%c0_17, %c0_18] : memref<4x8xbf16, #tpu.memory_space<vmem>>, vector<4x8xbf16>
    tpu.vector_store %arg8[%c0_17, %c0_18], %24 {strides = array<i32>} : memref<4x8xbf16, #tpu.memory_space<vmem>>, vector<4x8xbf16>,
    return
  }
  func.func @transform_0(%arg0: i32) -> (i32, i32) {
    %c0_i32 = arith.constant 0 : i32
    %c0_i32_0 = arith.constant 0 : i32
    return %arg0, %c0_i32 : i32, i32
  }
  func.func @transform_1(%arg0: i32) -> (i32, i32) {
    %c0_i32 = arith.constant 0 : i32
    %c0_i32_0 = arith.constant 0 : i32
    %c0_i32_1 = arith.constant 0 : i32
    return %c0_i32, %c0_i32_0 : i32, i32
  }
  func.func @transform_2(%arg0: i32) -> (i32, i32) {
    %c0_i32 = arith.constant 0 : i32
    %c0_i32_0 = arith.constant 0 : i32
    %c0_i32_1 = arith.constant 0 : i32
    return %c0_i32, %c0_i32_0 : i32, i32
  }
  func.func @transform_3(%arg0: i32) -> (i32, i32) {
    %c0_i32 = arith.constant 0 : i32
    %c0_i32_0 = arith.constant 0 : i32
    %c0_i32_1 = arith.constant 0 : i32
    return %c0_i32, %c0_i32_0 : i32, i32
  }
  func.func @transform_4(%arg0: i32) -> (i32, i32) {
    %c0_i32 = arith.constant 0 : i32
    %c0_i32_0 = arith.constant 0 : i32
    %c0_i32_1 = arith.constant 0 : i32
    return %c0_i32, %c0_i32_0 : i32, i32
  }
  func.func @transform_5(%arg0: i32) -> (i32, i32) {
    %c0_i32 = arith.constant 0 : i32
    %c0_i32_0 = arith.constant 0 : i32
    %c0_i32_1 = arith.constant 0 : i32
    return %c0_i32, %c0_i32_0 : i32, i32
  }
  func.func @transform_6(%arg0: i32) -> (i32, i32) {
    %c0_i32 = arith.constant 0 : i32
    %c0_i32_0 = arith.constant 0 : i32
    %c0_i32_1 = arith.constant 0 : i32
    return %c0_i32, %c0_i32_0 : i32, i32
  }
  func.func @transform_7(%arg0: i32) -> (i32, i32) {
    %c0_i32 = arith.constant 0 : i32
    %c0_i32_0 = arith.constant 0 : i32
    return %arg0, %c0_i32 : i32, i32
  }
}

</mosaic_0001>

<llo_original>
// kernel: tpu_custom_call.1
$region0: #{tpu_custom_call.1}
  #allocation0 [shape = 'u32[]', space=smem, size = 0x4, offset = 0x4, fixed_abs, tag = 'smem constant byte address 0x4 - core index']
  #allocation1 [shape = 'u32[144,128]{1,0:T(1,128)}', space=vmem, size = 0x12000, scoped, tag = 'internal scratch']
  %s0 = inlined_call_operand.hbm [shape: f32[4,16], index: 0, kind: input, shape index: {}]
  %s1 = inlined_call_operand.vmem [shape: bf16[16,128], index: 1, kind: input, shape index: {}]
  %s2 = inlined_call_operand.vmem [shape: f32[1,128], index: 2, kind: input, shape index: {}]
  %s3 = inlined_call_operand.vmem [shape: bf16[128,128], index: 3, kind: input, shape index: {}]
  %s4 = inlined_call_operand.hbm [shape: f32[1,128], index: 4, kind: input, shape index: {}]
  %s5 = inlined_call_operand.vmem [shape: bf16[128,8], index: 5, kind: input, shape index: {}]
  %s6 = inlined_call_operand.vmem [shape: f32[1,8], index: 6, kind: input, shape index: {}]
  %s7 = inlined_call_operand.hbm [shape: bf16[4,8], index: 7, kind: output, shape index: {}]
  %s8 = sld [smem:[#allocation0]]
  $region46: #{tpu_custom_call.1} parent=0
    _
  %s10 = ssub.s32 1, %s8
  %s11 = scalar_select 0, %s10, %s8
  $region1: #{tpu_custom_call.1} parent=0
    #allocation2 [shape = 'u8[2048]{0}', space=vmem, size = 0x800, scoped, tag = 'input window, operand 0, single buffered']
    #allocation3 [shape = 's32[1]{0}', space=sflag, size = 0x4, scoped, tag = 'scoped memory for tpu_custom_call.1']
    #allocation4 [shape = 's32[1]{0}', space=sflag, size = 0x4, scoped, tag = 'scoped memory for tpu_custom_call.1']
    #allocation5 [shape = 'u8[512]{0}', space=vmem, size = 0x400, scoped, tag = 'input window, operand 4, single buffered']
    #allocation6 [shape = 's32[1]{0}', space=sflag, size = 0x4, scoped, tag = 'scoped memory for tpu_custom_call.1']
    #allocation7 [shape = 'u8[1024]{0}', space=vmem, size = 0x400, scoped, tag = 'output window, operand 0, single buffered']
    %12 = vsyncpa [#allocation3], 0
    %13 = vsyncpa [#allocation6], 0
    %14 = vsyncpa [#allocation4], 0
    // Predicated region
    $region2: #{tpu_custom_call.1} parent=1 // pred_check
      _
    $region3: #{tpu_custom_call.1} parent=1 // pred_check_branch
      %16 = sbr.rel (0) target = $region5
    $region4: #{tpu_custom_call.1} parent=1 // pred_region
      %s18 = ssub.s32 64, 64
      %19 = vsyncadd [#allocation3], %s18
      %s21 = sshll.u32 [#allocation2], 4
      %s22 = int_to_ptr.vmem [resolvable:$true] %s21
      %24 = dma.hbm_to_vmem [thread:$0]  %s0, 64, %s22, [#allocation3]
    $region5: #{tpu_custom_call.1} parent=1 // pred_fallthru
      _
    // Predicated region
    $region6: #{tpu_custom_call.1} parent=1 // pred_check
      _
    $region7: #{tpu_custom_call.1} parent=1 // pred_check_branch
      %26 = sbr.rel (0) target = $region9
    $region8: #{tpu_custom_call.1} parent=1 // pred_region
      _
    $region9: #{tpu_custom_call.1} parent=1 // pred_fallthru
      _
    // Predicated region
    $region10: #{tpu_custom_call.1} parent=1 // pred_check
      _
    $region11: #{tpu_custom_call.1} parent=1 // pred_check_branch
      %28 = sbr.rel (0) target = $region13
    $region12: #{tpu_custom_call.1} parent=1 // pred_region
      _
    $region13: #{tpu_custom_call.1} parent=1 // pred_fallthru
      _
    // Predicated region
    $region14: #{tpu_custom_call.1} parent=1 // pred_check
      _
    $region15: #{tpu_custom_call.1} parent=1 // pred_check_branch
      %30 = sbr.rel (0) target = $region17
    $region16: #{tpu_custom_call.1} parent=1 // pred_region
      _
    $region17: #{tpu_custom_call.1} parent=1 // pred_fallthru
      _
    // Predicated region
    $region18: #{tpu_custom_call.1} parent=1 // pred_check
      _
    $region19: #{tpu_custom_call.1} parent=1 // pred_check_branch
      %32 = sbr.rel (0) target = $region21
    $region20: #{tpu_custom_call.1} parent=1 // pred_region
      %s34 = ssub.s32 16, 16
      %35 = vsyncadd [#allocation6], %s34
      %s37 = sshll.u32 [#allocation5], 4
      %s38 = int_to_ptr.vmem [resolvable:$true] %s37
      %40 = dma.hbm_to_vmem [thread:$0]  %s4, 16, %s38, [#allocation6]
    $region21: #{tpu_custom_call.1} parent=1 // pred_fallthru
      _
    // Predicated region
    $region22: #{tpu_custom_call.1} parent=1 // pred_check
      _
    $region23: #{tpu_custom_call.1} parent=1 // pred_check_branch
      %42 = sbr.rel (0) target = $region25
    $region24: #{tpu_custom_call.1} parent=1 // pred_region
      _
    $region25: #{tpu_custom_call.1} parent=1 // pred_fallthru
      _
    // Predicated region
    $region26: #{tpu_custom_call.1} parent=1 // pred_check
      _
    $region27: #{tpu_custom_call.1} parent=1 // pred_check_branch
      %44 = sbr.rel (0) target = $region29
    $region28: #{tpu_custom_call.1} parent=1 // pred_region
      _
    $region29: #{tpu_custom_call.1} parent=1 // pred_fallthru
      _
    // Predicated region
    $region30: #{tpu_custom_call.1} parent=1 // pred_check
      _
    $region31: #{tpu_custom_call.1} parent=1 // pred_check_branch
      %46 = sbr.rel (0) target = $region33
    $region32: #{tpu_custom_call.1} parent=1 // pred_region
      %47 = dma.done [#allocation3], 64
    $region33: #{tpu_custom_call.1} parent=1 // pred_fallthru
      _
    // Predicated region
    $region34: #{tpu_custom_call.1} parent=1 // pred_check
      _
    $region35: #{tpu_custom_call.1} parent=1 // pred_check_branch
      %49 = sbr.rel (0) target = $region37
    $region36: #{tpu_custom_call.1} parent=1 // pred_region
      %50 = dma.done [#allocation6], 16
    $region37: #{tpu_custom_call.1} parent=1 // pred_fallthru
      _
    %v52 = vld [vmem:[#allocation2] sm:$0xf]
    %v53 = vpack.c.bf16 %v52, %v52
    %v54 = vld [vmem:[%s1] sm:$0xf]
    %v55 = vld [vmem:[%s1 + $0x4] sm:$0xf]
    %v56 = vld [vmem:[%s2] sm:$0x1]
    %v58 = vlaneseq
    %v59 = vshrl.u32 %v58, 7
    %v60 = vsub.s32 0, %v59
    %v61 = vrot.slane %v56, %v60
    %v65 = vunpack.c.l.b16 %v54
    %v66 = vunpack.c.l.b16 %v55
    %v67 = vpack.c.b16 %v66, %v65
    %vm69 = vcmask 130048
    %v71 = vsel %vm69, %v53, 0
    %73 = vmatprep.subr.bf16.mxu0 0
    %74 = vmatpush1.bf16.msra.mxu0 0
    %75 = vmatprep.subr.bf16.mxu0 0
    %76 = vmatpush1.bf16.msra.mxu0 0
    %77 = vmatprep.subr.bf16.mxu0 0
    %78 = vmatpush1.bf16.msra.mxu0 0
    %79 = vmatprep.subr.bf16.mxu0 0
    %80 = vmatpush1.bf16.msra.mxu0 0
    %81 = vmatprep.subr.bf16.mxu0 0
    %82 = vmatpush1.bf16.msra.mxu0 0
    %83 = vmatprep.subr.bf16.mxu0 0
    %84 = vmatpush1.bf16.msra.mxu0 0
    %85 = vmatprep.subr.bf16.mxu0 0
    %86 = vmatpush1.bf16.msra.mxu0 0
    %87 = vmatprep.subr.bf16.mxu0 0
    %88 = vmatpush1.bf16.msra.mxu0 %v67
    %89 = vmatprep.subr.bf16.mxu0 0
    %90 = vmatpush2.bf16.msra.mxu0 0
    %91 = vmatprep.subr.bf16.mxu0 0
    %92 = vmatpush2.bf16.msra.mxu0 0
    %93 = vmatprep.subr.bf16.mxu0 0
    %94 = vmatpush2.bf16.msra.mxu0 0
    %95 = vmatprep.subr.bf16.mxu0 0
    %96 = vmatpush2.bf16.msra.mxu0 0
    %97 = vmatprep.subr.bf16.mxu0 0
    %98 = vmatpush2.bf16.msra.mxu0 0
    %99 = vmatprep.subr.bf16.mxu0 0
    %100 = vmatpush2.bf16.msra.mxu0 0
    %101 = vmatprep.subr.bf16.mxu0 0
    %102 = vmatpush2.bf16.msra.mxu0 0
    %103 = vmatprep.subr.bf16.mxu0 0
    %104 = vmatpush2.bf16.msra.mxu0 0
    %105 = vmatprep.mubr.bf16.mxu0 0
    %106 = vmatmul.mubr.bf16.gmra.mxu0 %v71
    %v107 = vpop.f32.mrf.mxu0
    %v108 = vadd.f32 %v61, %v107
    %v109 = vpop.f32.mrf.mxu0
    %v110 = vpop.f32.mrf.mxu0
    %v111 = vpop.f32.mrf.mxu0
    %112 = vdwg.mxu0
    %v113 = vmax.f32 %v108, 0.0
    %v114 = vpack.c.bf16 %v113, %v113
    %v115 = vld [vmem:[%s3] sm:$0xf]
    %v116 = vld [vmem:[%s3 + $0x4] sm:$0xf]
    %v117 = vld [vmem:[%s3 + $0x8] sm:$0xf]
    %v118 = vld [vmem:[%s3 + $0xc] sm:$0xf]
    %v119 = vld [vmem:[%s3 + $0x10] sm:$0xf]
    %v120 = vld [vmem:[%s3 + $0x14] sm:$0xf]
    %v121 = vld [vmem:[%s3 + $0x18] sm:$0xf]
    %v122 = vld [vmem:[%s3 + $0x1c] sm:$0xf]
    %v123 = vld [vmem:[%s3 + $0x20] sm:$0xf]
    %v124 = vld [vmem:[%s3 + $0x24] sm:$0xf]
    %v125 = vld [vmem:[%s3 + $0x28] sm:$0xf]
    %v126 = vld [vmem:[%s3 + $0x2c] sm:$0xf]
    %v127 = vld [vmem:[%s3 + $0x30] sm:$0xf]
    %v128 = vld [vmem:[%s3 + $0x34] sm:$0xf]
    %v129 = vld [vmem:[%s3 + $0x38] sm:$0xf]
    %v130 = vld [vmem:[%s3 + $0x3c] sm:$0xf]
    %v131 = vld [vmem:[#allocation5] sm:$0x1]
    %v133 = vlaneseq
    %v134 = vshrl.u32 %v133, 7
    %v135 = vsub.s32 0, %v134
    %v136 = vrot.slane %v131, %v135
    %v154 = vunpack.c.l.b16 %v115
    %v155 = vunpack.c.l.b16 %v116
    %v156 = vunpack.c.l.b16 %v117
    %v157 = vunpack.c.l.b16 %v118
    %v158 = vunpack.c.l.b16 %v119
    %v159 = vunpack.c.l.b16 %v120
    %v160 = vunpack.c.l.b16 %v121
    %v161 = vunpack.c.l.b16 %v122
    %v162 = vunpack.c.l.b16 %v123
    %v163 = vunpack.c.l.b16 %v124
    %v164 = vunpack.c.l.b16 %v125
    %v165 = vunpack.c.l.b16 %v126
    %v166 = vunpack.c.l.b16 %v127
    %v167 = vunpack.c.l.b16 %v128
    %v168 = vunpack.c.l.b16 %v129
    %v169 = vunpack.c.l.b16 %v130
    %v170 = vpack.c.b16 %v155, %v154
    %v171 = vpack.c.b16 %v157, %v156
    %v172 = vpack.c.b16 %v159, %v158
    %v173 = vpack.c.b16 %v161, %v160
    %v174 = vpack.c.b16 %v163, %v162
    %v175 = vpack.c.b16 %v165, %v164
    %v176 = vpack.c.b16 %v167, %v166
    %v177 = vpack.c.b16 %v169, %v168
    %186 = vmatprep.subr.bf16.mxu0 0
    %187 = vmatpush1.bf16.msra.mxu0 %v177
    %188 = vmatprep.subr.bf16.mxu0 0
    %189 = vmatpush1.bf16.msra.mxu0 %v176
    %190 = vmatprep.subr.bf16.mxu0 0
    %191 = vmatpush1.bf16.msra.mxu0 %v175
    %192 = vmatprep.subr.bf16.mxu0 0
    %193 = vmatpush1.bf16.msra.mxu0 %v174
    %194 = vmatprep.subr.bf16.mxu0 0
    %195 = vmatpush1.bf16.msra.mxu0 %v173
    %196 = vmatprep.subr.bf16.mxu0 0
    %197 = vmatpush1.bf16.msra.mxu0 %v172
    %198 = vmatprep.subr.bf16.mxu0 0
    %199 = vmatpush1.bf16.msra.mxu0 %v171
    %200 = vmatprep.subr.bf16.mxu0 0
    %201 = vmatpush1.bf16.msra.mxu0 %v170
    %202 = vmatprep.subr.bf16.mxu0 0
    %203 = vmatpush2.bf16.msra.mxu0 0
    %204 = vmatprep.subr.bf16.mxu0 0
    %205 = vmatpush2.bf16.msra.mxu0 0
    %206 = vmatprep.subr.bf16.mxu0 0
    %207 = vmatpush2.bf16.msra.mxu0 0
    %208 = vmatprep.subr.bf16.mxu0 0
    %209 = vmatpush2.bf16.msra.mxu0 0
    %210 = vmatprep.subr.bf16.mxu0 0
    %211 = vmatpush2.bf16.msra.mxu0 0
    %212 = vmatprep.subr.bf16.mxu0 0
    %213 = vmatpush2.bf16.msra.mxu0 0
    %214 = vmatprep.subr.bf16.mxu0 0
    %215 = vmatpush2.bf16.msra.mxu0 0
    %216 = vmatprep.subr.bf16.mxu0 0
    %217 = vmatpush2.bf16.msra.mxu0 0
    %218 = vmatprep.mubr.bf16.mxu0 0
    %219 = vmatmul.mubr.bf16.gmra.mxu0 %v114
    %v220 = vpop.f32.mrf.mxu0
    %v221 = vadd.f32 %v136, %v220
    %v222 = vpop.f32.mrf.mxu0
    %v223 = vpop.f32.mrf.mxu0
    %v224 = vpop.f32.mrf.mxu0
    %225 = vdwg.mxu0
    %v226 = vmax.f32 %v221, 0.0
    %v227 = vpack.c.bf16 %v226, %v226
    %v228 = vld [vmem:[%s5] sm:$0xf]
    %v229 = vld [vmem:[%s5 + $0x4] sm:$0xf]
    %v230 = vld [vmem:[%s5 + $0x8] sm:$0xf]
    %v231 = vld [vmem:[%s5 + $0xc] sm:$0xf]
    %v232 = vld [vmem:[%s5 + $0x10] sm:$0xf]
    %v233 = vld [vmem:[%s5 + $0x14] sm:$0xf]
    %v234 = vld [vmem:[%s5 + $0x18] sm:$0xf]
    %v235 = vld [vmem:[%s5 + $0x1c] sm:$0xf]
    %v236 = vld [vmem:[%s5 + $0x20] sm:$0xf]
    %v237 = vld [vmem:[%s5 + $0x24] sm:$0xf]
    %v238 = vld [vmem:[%s5 + $0x28] sm:$0xf]
    %v239 = vld [vmem:[%s5 + $0x2c] sm:$0xf]
    %v240 = vld [vmem:[%s5 + $0x30] sm:$0xf]
    %v241 = vld [vmem:[%s5 + $0x34] sm:$0xf]
    %v242 = vld [vmem:[%s5 + $0x38] sm:$0xf]
    %v243 = vld [vmem:[%s5 + $0x3c] sm:$0xf]
    %v244 = vld [vmem:[%s6] sm:$0x1]
    %v246 = vlaneseq
    %v247 = vshrl.u32 %v246, 7
    %v248 = vsub.s32 0, %v247
    %v249 = vrot.slane %v244, %v248
    %v267 = vunpack.c.l.b16 %v228
    %v268 = vunpack.c.l.b16 %v229
    %v269 = vunpack.c.l.b16 %v230
    %v270 = vunpack.c.l.b16 %v231
    %v271 = vunpack.c.l.b16 %v232
    %v272 = vunpack.c.l.b16 %v233
    %v273 = vunpack.c.l.b16 %v234
    %v274 = vunpack.c.l.b16 %v235
    %v275 = vunpack.c.l.b16 %v236
    %v276 = vunpack.c.l.b16 %v237
    %v277 = vunpack.c.l.b16 %v238
    %v278 = vunpack.c.l.b16 %v239
    %v279 = vunpack.c.l.b16 %v240
    %v280 = vunpack.c.l.b16 %v241
    %v281 = vunpack.c.l.b16 %v242
    %v282 = vunpack.c.l.b16 %v243
    %v283 = vpack.c.b16 %v268, %v267
    %v284 = vpack.c.b16 %v270, %v269
    %v285 = vpack.c.b16 %v272, %v271
    %v286 = vpack.c.b16 %v274, %v273
    %v287 = vpack.c.b16 %v276, %v275
    %v288 = vpack.c.b16 %v278, %v277
    %v289 = vpack.c.b16 %v280, %v279
    %v290 = vpack.c.b16 %v282, %v281
    %299 = vmatprep.subr.bf16.mxu0 0
    %300 = vmatpush1.bf16.msra.mxu0 %v290
    %301 = vmatprep.subr.bf16.mxu0 0
    %302 = vmatpush1.bf16.msra.mxu0 %v289
    %303 = vmatprep.subr.bf16.mxu0 0
    %304 = vmatpush1.bf16.msra.mxu0 %v288
    %305 = vmatprep.subr.bf16.mxu0 0
    %306 = vmatpush1.bf16.msra.mxu0 %v287
    %307 = vmatprep.subr.bf16.mxu0 0
    %308 = vmatpush1.bf16.msra.mxu0 %v286
    %309 = vmatprep.subr.bf16.mxu0 0
    %310 = vmatpush1.bf16.msra.mxu0 %v285
    %311 = vmatprep.subr.bf16.mxu0 0
    %312 = vmatpush1.bf16.msra.mxu0 %v284
    %313 = vmatprep.subr.bf16.mxu0 0
    %314 = vmatpush1.bf16.msra.mxu0 %v283
    %315 = vmatprep.subr.bf16.mxu0 0
    %316 = vmatpush2.bf16.msra.mxu0 0
    %317 = vmatprep.subr.bf16.mxu0 0
    %318 = vmatpush2.bf16.msra.mxu0 0
    %319 = vmatprep.subr.bf16.mxu0 0
    %320 = vmatpush2.bf16.msra.mxu0 0
    %321 = vmatprep.subr.bf16.mxu0 0
    %322 = vmatpush2.bf16.msra.mxu0 0
    %323 = vmatprep.subr.bf16.mxu0 0
    %324 = vmatpush2.bf16.msra.mxu0 0
    %325 = vmatprep.subr.bf16.mxu0 0
    %326 = vmatpush2.bf16.msra.mxu0 0
    %327 = vmatprep.subr.bf16.mxu0 0
    %328 = vmatpush2.bf16.msra.mxu0 0
    %329 = vmatprep.subr.bf16.mxu0 0
    %330 = vmatpush2.bf16.msra.mxu0 0
    %331 = vmatprep.mubr.bf16.mxu0 0
    %332 = vmatmul.mubr.bf16.gmra.mxu0 %v227
    %v333 = vpop.f32.mrf.mxu0
    %v334 = vadd.f32 %v249, %v333
    %v335 = vpop.f32.mrf.mxu0
    %v336 = vpop.f32.mrf.mxu0
    %v337 = vpop.f32.mrf.mxu0
    %338 = vdwg.mxu0
    %v339 = vtanh.pop %v334
    %v340 = vpack.c.bf16 %v339, %v339
    %vm341 = vcmask 58368
    %342 = vst.msk [vmem:[#allocation7] sm:$0x3] %vm341, %v340
    // Predicated region
    $region38: #{tpu_custom_call.1} parent=1 // pred_check
      _
    $region39: #{tpu_custom_call.1} parent=1 // pred_check_branch
      %344 = sbr.rel (0) target = $region41
    $region40: #{tpu_custom_call.1} parent=1 // pred_region
      %s346 = ssub.s32 32, 32
      %347 = vsyncadd [#allocation4], %s346
      %s349 = sshll.u32 [#allocation7], 4
      %s350 = int_to_ptr.vmem [resolvable:$true] %s349
      %352 = dma.vmem_to_hbm [thread:$0]  %s350, 32, %s7, [#allocation4]
    $region41: #{tpu_custom_call.1} parent=1 // pred_fallthru
      _
    // Predicated region
    $region42: #{tpu_custom_call.1} parent=1 // pred_check
      _
    $region43: #{tpu_custom_call.1} parent=1 // pred_check_branch
      %354 = sbr.rel (0) target = $region45
    $region44: #{tpu_custom_call.1} parent=1 // pred_region
      %355 = dma.done [#allocation4], 32
    $region45: #{tpu_custom_call.1} parent=1 // pred_fallthru
      _
    %356 = vsyncpa [#allocation3], 1
    %357 = vsyncpa [#allocation6], 1
    %358 = vsyncpa [#allocation4], 1

</llo_original>
